<compile_context>
chip_gen: v7x
topology: tpu7x:2x2x1
jax: 0.10.0
libtpu: 0.0.40
codegen_flags: <defaults>
</compile_context>

<pallas_src>
import functools

import jax
import jax.numpy as jnp
import numpy as np
from jax.experimental import pallas as pl
from jax.experimental.pallas import tpu as pltpu

try:
    from scipy.optimize import linear_sum_assignment as _scipy_lsa
except Exception:  # scipy not installed in the sandbox -> pure-Python fallback below
    _scipy_lsa = None


# ----------------------------------------------------------------------------- kernel
def _refined_recip(x):
    # EUP approx reciprocal + one Newton step: ~f32-exact, keeps the divide off the VALU path.
    r = pl.reciprocal(x, approx=True)
    return r * (2.0 - x * r)


def _cost_kernel(lg_ref, onehot_ref, tboxT_ref, c_ref, *,
                 box_col, c_pos, c_neg, w_bbox, w_giou_neg):
    # lg_ref    : [TQ, CpX]  padded class logits for this query tile; columns
    #             box_col..box_col+3 hold the query box (cx, cy, w, h).
    # onehot_ref: [CpX, Tp]  column j = one_hot(tgt_ids[j]); zero rows for the box-coord
    #             columns and zero columns for padded targets.
    # tboxT_ref : [8, Tp]    target boxes (targets on lanes): rows 0..3 = (cx, cy, w, h),
    #             rows 4..7 = (x0, y0, x1, y1) precomputed in the wrapper.
    # c_ref     : [TQ, Tp]   output cost tile.
    lg = lg_ref[...].astype(jnp.float32)

    # ---- class cost: gather logits first (MXU one-hot matmul), focal math on [TQ, Tp] only.
    g = jnp.dot(lg, onehot_ref[...], preferred_element_type=jnp.float32)   # [TQ, Tp]
    prob = jax.nn.sigmoid(g)
    one_m = 1.0 - prob
    # gamma == 2 is static -> explicit squares (VPU); w_class folded into c_pos / c_neg.
    cls_cost = c_pos * (one_m * one_m) * (-jnp.log(prob + 1e-8)) \
             - c_neg * (prob * prob) * (-jnp.log(one_m + 1e-8))

    # ---- per-query box coords, read straight from the logits tile (no separate obox stream).
    ob = lg[:, box_col:box_col + 4]                      # [TQ, 4]
    ocx = ob[:, 0:1]
    ocy = ob[:, 1:2]
    ow = ob[:, 2:3]
    oh = ob[:, 3:4]

    tb = tboxT_ref[...].astype(jnp.float32)              # [8, Tp] (lane-dense)
    tcx = tb[0:1]
    tcy = tb[1:2]
    tw = tb[2:3]
    th = tb[3:4]
    tx0 = tb[4:5]
    ty0 = tb[5:6]
    tx1 = tb[6:7]
    ty1 = tb[7:8]

    # torch.cdist(out_bbox, tgt_bbox) with p=2 over (cx, cy, w, h); sum of squares is >= 0.
    dcx = ocx - tcx
    dcy = ocy - tcy
    dw = ow - tw
    dh = oh - th
    bbox_cost = jnp.sqrt(dcx * dcx + dcy * dcy + dw * dw + dh * dh)

    # query-side xyxy ([TQ, 1] work only); target-side was precomputed in the wrapper.
    ox0 = ocx - 0.5 * ow
    oy0 = ocy - 0.5 * oh
    ox1 = ocx + 0.5 * ow
    oy1 = ocy + 0.5 * oh
    area_o = ow * oh                                      # [TQ, 1]
    area_t = tw * th                                      # [1, Tp]

    iw = jnp.maximum(jnp.minimum(ox1, tx1) - jnp.maximum(ox0, tx0), 0.0)
    ih = jnp.maximum(jnp.minimum(oy1, ty1) - jnp.maximum(oy0, ty0), 0.0)
    inter = iw * ih
    union = jnp.maximum(area_o + area_t - inter, 1e-12)
    iou = inter * _refined_recip(union)

    ew = jnp.maximum(jnp.maximum(ox1, tx1) - jnp.minimum(ox0, tx0), 0.0)
    eh = jnp.maximum(jnp.maximum(oy1, ty1) - jnp.minimum(oy0, ty0), 0.0)
    earea = jnp.maximum(ew * eh, 1e-12)
    giou = iou - (earea - union) * _refined_recip(earea)

    c_ref[...] = w_bbox * bbox_cost + cls_cost + w_giou_neg * giou


# ----------------------------------------------------------------------------- wrapper
def _round_up(x, m):
    return ((x + m - 1) // m) * m


def compute_cost_blocks(pred_logits, pred_boxes, labels_list, boxes_list,
                        cost_class=1.0, cost_bbox=1.0, cost_giou=1.0):
    """Per-image matching cost blocks.

    Returns C of shape [bs, num_queries, Tp]; the valid block for image i is
    C[i, :, :len(labels_list[i])].  Only these diagonal blocks are consumed by the Hungarian
    assignment, so the kernel never materializes the full [bs*nq, sum(T)] matrix.
    """
    bs, nq, nc = pred_logits.shape
    sizes = [int(l.shape[0]) for l in labels_list]
    Tmax = max(sizes) if sizes else 0
    if Tmax == 0:                                    # no targets in the whole batch
        return jnp.zeros((bs, nq, 0), jnp.float32)

    # ---- query tiling (generation-aware): single step for small nq (the grid is a serial
    # loop on single-TC v5e/v6e, so a forced split is pure per-step overhead); for large nq
    # use an even number of equal tiles so v7x megacore shards them evenly.  The batch axis
    # is a second "parallel" grid axis.
    TQ_CAP = 512
    nq8 = _round_up(nq, 8)
    if nq8 <= TQ_CAP:
        n_steps = 1
        TQ = nq8
    else:
        n_steps = 2
        while _round_up(-(-nq8 // n_steps), 8) > TQ_CAP:
            n_steps += 2
        TQ = _round_up(-(-nq8 // n_steps), 8)
    Qp = n_steps * TQ

    CpX = _round_up(nc + 4, 8)     # class dim + 4 folded box-coord columns (sublane multiple)
    box_col = nc
    Tp = _round_up(Tmax, 128)      # targets padded to lane width (lane-dense output stores)

    # ---- padded logits tile with the query boxes folded into 4 spare columns.
    safe_box = jnp.array([0.5, 0.5, 1.0, 1.0], jnp.float32)   # non-degenerate pad box
    logits_ext = jnp.zeros((bs, Qp, CpX), jnp.float32)
    logits_ext = logits_ext.at[:, :, box_col:box_col + 4].set(
        jnp.broadcast_to(safe_box, (bs, Qp, 4)))
    logits_ext = logits_ext.at[:, :nq, :nc].set(pred_logits.astype(jnp.float32))
    logits_ext = logits_ext.at[:, :nq, box_col:box_col + 4].set(pred_boxes.astype(jnp.float32))

    # ---- per-image one-hot gather matrix and transposed target boxes (targets on lanes).
    # tboxT rows: 0..3 = (cx, cy, w, h), 4..7 = (x0, y0, x1, y1); padded columns keep the
    # safe box so the IoU math stays finite (they are sliced away by the caller).
    onehot = jnp.zeros((bs, CpX, Tp), jnp.float32)
    safe_rows = jnp.array([0.5, 0.5, 1.0, 1.0, 0.0, 0.0, 1.0, 1.0], jnp.float32)
    tboxT = jnp.tile(safe_rows[None, :, None], (bs, 1, Tp))
    for b in range(bs):
        s = sizes[b]
        if s == 0:
            continue
        lab = labels_list[b].astype(jnp.int32)
        onehot = onehot.at[b, lab, jnp.arange(s)].set(1.0)
        bx = boxes_list[b].astype(jnp.float32)                 # [s, 4] (cx, cy, w, h)
        x0 = bx[:, 0] - 0.5 * bx[:, 2]
        y0 = bx[:, 1] - 0.5 * bx[:, 3]
        x1 = bx[:, 0] + 0.5 * bx[:, 2]
        y1 = bx[:, 1] + 0.5 * bx[:, 3]
        rows = jnp.stack([bx[:, 0], bx[:, 1], bx[:, 2], bx[:, 3], x0, y0, x1, y1], axis=0)
        tboxT = tboxT.at[b, :, :s].set(rows)

    kernel = functools.partial(
        _cost_kernel,
        box_col=box_col,
        c_pos=float(cost_class) * 0.25,          # w_class * alpha
        c_neg=float(cost_class) * 0.75,          # w_class * (1 - alpha)
        w_bbox=float(cost_bbox),
        w_giou_neg=-float(cost_giou))

    # VMEM budget: every block double-buffered by the pipeline, plus headroom.
    block_bytes = 4 * (TQ * CpX + CpX * Tp + 8 * Tp + TQ * Tp)
    vmem_limit = int(min(max(4 * block_bytes, 8 << 20), 64 << 20))

    cost_est = pl.CostEstimate(
        flops=int(2 * bs * Qp * CpX * Tp + 60 * bs * Qp * Tp),
        transcendentals=int(6 * bs * Qp * Tp),
        bytes_accessed=int(4 * (bs * Qp * CpX + bs * CpX * Tp + bs * 8 * Tp + bs * Qp * Tp)))

    c_pad = pl.pallas_call(
        kernel,
        out_shape=jax.ShapeDtypeStruct((bs, Qp, Tp), jnp.float32),
        grid=(bs, n_steps),
        in_specs=[
            pl.BlockSpec((None, TQ, CpX), lambda b, i: (b, i, 0)),
            # constant-per-image blocks: their block index only changes on the outer batch
            # axis, so the pipeline re-fetches them once per image, not once per query tile.
            pl.BlockSpec((None, CpX, Tp), lambda b, i: (b, 0, 0)),
            pl.BlockSpec((None, 8, Tp), lambda b, i: (b, 0, 0)),
        ],
        out_specs=pl.BlockSpec((None, TQ, Tp), lambda b, i: (b, i, 0)),
        compiler_params=pltpu.CompilerParams(
            dimension_semantics=("parallel", "parallel"),
            vmem_limit_bytes=vmem_limit),
        cost_estimate=cost_est,
    )(logits_ext, onehot, tboxT)

    return c_pad[:, :nq, :]


# --------------------------------------------------------------- CPU glue: assignment
def _linear_sum_assignment(cost):
    """Rectangular min-cost assignment. CPU glue — same role as scipy in the torch module."""
    cost = np.asarray(cost, dtype=np.float64)
    if cost.shape[0] == 0 or cost.shape[1] == 0:
        return np.zeros((0,), np.int64), np.zeros((0,), np.int64)
    if _scipy_lsa is not None:
        r, c = _scipy_lsa(cost)
        return np.asarray(r, np.int64), np.asarray(c, np.int64)
    # Pure-Python fallback (Kuhn's algorithm with potentials).
    transposed = cost.shape[0] > cost.shape[1]
    if transposed:
        cost = cost.T
    n, m = cost.shape  # n <= m
    INF = float("inf")
    u = [0.0] * (n + 1)
    v = [0.0] * (m + 1)
    p = [0] * (m + 1)
    way = [0] * (m + 1)
    for i in range(1, n + 1):
        p[0] = i
        j0 = 0
        minv = [INF] * (m + 1)
        used = [False] * (m + 1)
        while True:
            used[j0] = True
            i0 = p[j0]
            delta = INF
            j1 = 0
            for j in range(1, m + 1):
                if not used[j]:
                    cur = cost[i0 - 1, j - 1] - u[i0] - v[j]
                    if cur < minv[j]:
                        minv[j] = cur
                        way[j] = j0
                    if minv[j] < delta:
                        delta = minv[j]
                        j1 = j
            for j in range(m + 1):
                if used[j]:
                    u[p[j]] += delta
                    v[j] -= delta
                else:
                    minv[j] -= delta
            j0 = j1
            if p[j0] == 0:
                break
        while True:
            j1 = way[j0]
            p[j0] = p[j1]
            j0 = j1
            if j0 == 0:
                break
    rows, cols = [], []
    for j in range(1, m + 1):
        if p[j] != 0:
            rows.append(p[j] - 1)
            cols.append(j - 1)
    rows = np.asarray(rows, np.int64)
    cols = np.asarray(cols, np.int64)
    if transposed:
        rows, cols = cols, rows
    order = np.argsort(rows)
    return rows[order], cols[order]


# ----------------------------------------------------------------------------- module
class HungarianMatcherPallas:
    def __init__(self, multi_frame, cost_class=1, cost_bbox=1, cost_giou=1, cost_mask=1):
        self.multi_frame = multi_frame
        self.cost_class = cost_class
        self.cost_bbox = cost_bbox
        self.cost_giou = cost_giou
        self.cost_mask = cost_mask
        assert cost_class != 0 or cost_bbox != 0 or cost_giou != 0 or cost_mask != 0

    def forward(self, outputs, targets, nf, valid_ratios, online=False, enc_aux_loss=False):
        # TODO(synk): only the online=True, enc_aux_loss=False branch is ported; the
        # multi-frame (online=False) cdist-over-frames branch is not implemented.
        assert online and not enc_aux_loss
        bs, num_queries = outputs["pred_logits"].shape[:2]
        labels_list = [v["labels"] for v in targets]
        boxes_list = [v["boxes"][nf] for v in targets]
        sizes = [int(l.shape[0]) for l in labels_list]
        if sum(sizes) == 0:
            empty = np.zeros((0,), np.int64)
            return [(empty, empty) for _ in range(bs)]
        C = compute_cost_blocks(outputs["pred_logits"], outputs["pred_boxes"],
                                labels_list, boxes_list,
                                cost_class=self.cost_class,
                                cost_bbox=self.cost_bbox,
                                cost_giou=self.cost_giou)
        C = np.asarray(jax.block_until_ready(C))          # [bs, num_queries, Tp]
        indices = []
        for i, s in enumerate(sizes):
            r, c = _linear_sum_assignment(C[i, :, :s])
            indices.append((np.asarray(r, np.int64), np.asarray(c, np.int64)))
        return indices


# ------------------------------------------------------------------- numpy reference
def _reference_cost_np(pred_logits, pred_boxes, tgt_ids, tgt_boxes, wc, wb, wg):
    logits = np.asarray(pred_logits, np.float32).reshape(-1, pred_logits.shape[-1])
    boxes = np.asarray(pred_boxes, np.float32).reshape(-1, 4)
    tgt_ids = np.asarray(tgt_ids)
    tb = np.asarray(tgt_boxes, np.float32)
    prob = 1.0 / (1.0 + np.exp(-logits))
    alpha, gamma = 0.25, 2.0
    neg = (1 - alpha) * prob ** gamma * (-np.log(1 - prob + 1e-8))
    pos = alpha * (1 - prob) ** gamma * (-np.log(prob + 1e-8))
    cls_cost = pos[:, tgt_ids] - neg[:, tgt_ids]
    bbox_cost = np.sqrt(((boxes[:, None, :] - tb[None, :, :]) ** 2).sum(-1))

    def to_xyxy(b):
        return np.stack([b[:, 0] - 0.5 * b[:, 2], b[:, 1] - 0.5 * b[:, 3],
                         b[:, 0] + 0.5 * b[:, 2], b[:, 1] + 0.5 * b[:, 3]], -1)

    a, b = to_xyxy(boxes), to_xyxy(tb)
    area_a = (a[:, 2] - a[:, 0]) * (a[:, 3] - a[:, 1])
    area_b = (b[:, 2] - b[:, 0]) * (b[:, 3] - b[:, 1])
    lt = np.maximum(a[:, None, :2], b[None, :, :2])
    rb = np.minimum(a[:, None, 2:], b[None, :, 2:])
    wh = np.clip(rb - lt, 0, None)
    inter = wh[..., 0] * wh[..., 1]
    union = area_a[:, None] + area_b[None, :] - inter
    iou = inter / union
    lt2 = np.minimum(a[:, None, :2], b[None, :, :2])
    rb2 = np.maximum(a[:, None, 2:], b[None, :, 2:])
    wh2 = np.clip(rb2 - lt2, 0, None)
    earea = wh2[..., 0] * wh2[..., 1]
    giou = iou - (earea - union) / earea
    C = wb * bbox_cost + wc * cls_cost + wg * (-giou)
    return C.reshape(pred_logits.shape[0], pred_logits.shape[1], -1)


# ------------------------------------------------------------------------------- main
if __name__ == "__main__":
    key = jax.random.PRNGKey(0)
    k1, k2, k3 = jax.random.split(key, 3)

    bs, num_queries, num_classes, nf = 2, 16, 8, 0
    sizes = [3, 5]

    pred_logits = jax.random.normal(k1, (bs, num_queries, num_classes), jnp.float32)
    pred_boxes = jax.nn.sigmoid(jax.random.normal(k2, (bs, num_queries, 4), jnp.float32))
    outputs = {"pred_logits": pred_logits, "pred_boxes": pred_boxes}

    tkeys = jax.random.split(k3, 2 * len(sizes))
    targets = []
    for i, s in enumerate(sizes):
        labels = jax.random.randint(tkeys[2 * i], (s,), 0, num_classes, jnp.int32)
        boxes = jax.nn.sigmoid(jax.random.normal(tkeys[2 * i + 1], (1, s, 4), jnp.float32))
        targets.append({"labels": labels, "boxes": boxes})

    labels_list = [v["labels"] for v in targets]
    boxes_list = [v["boxes"][nf] for v in targets]

    # Run the Pallas kernel once and block on the result.
    C = compute_cost_blocks(pred_logits, pred_boxes, labels_list, boxes_list, 1.0, 1.0, 1.0)
    C = np.asarray(jax.block_until_ready(C))

    # Check the per-image diagonal blocks against a plain-NumPy reference of the full matrix.
    tgt_ids = jnp.concatenate(labels_list)
    tgt_bbox = jnp.concatenate(boxes_list)
    C_ref = _reference_cost_np(pred_logits, pred_boxes, tgt_ids, tgt_bbox, 1.0, 1.0, 1.0)
    start = 0
    for i, s in enumerate(sizes):
        blk_ref = C_ref[i, :, start:start + s]
        blk = C[i, :, :s]
        assert np.allclose(blk, blk_ref, rtol=1e-3, atol=1e-3), f"cost block {i} mismatch"
        start += s

    # Full forward (kernel + CPU Hungarian assignment), same outputs as the torch module.
    matcher = HungarianMatcherPallas(multi_frame=False, cost_class=1, cost_bbox=1, cost_giou=1)
    indices = matcher.forward(outputs, targets, nf, valid_ratios=None, online=True)
    assert len(indices) == bs
    for (r, c), s in zip(indices, sizes):
        assert r.shape == (s,) and c.shape == (s,)
        assert len(np.unique(np.asarray(r))) == s and len(np.unique(np.asarray(c))) == s

    print("KERNEL_OK")
</pallas_src>

<mosaic_0001>
module attributes {stable_mosaic.version = 11 : i64} {
  func.func @_cost_kernel(%arg0: i32, %arg1: i32, %arg2: memref<1x16x16xf32, #tpu.memory_space<vmem>>, %arg3: memref<1x16x128xf32, #tpu.memory_space<vmem>>, %arg4: memref<1x8x128xf32, #tpu.memory_space<vmem>>, %arg5: memref<1x16x128xf32, #tpu.memory_space<vmem>>) attributes {dimension_semantics = [#tpu.dimension_semantics<parallel>, #tpu.dimension_semantics<parallel>], iteration_bounds = array<i64: 2, 1>, scalar_prefetch = 0 : i64, scratch_operands = 0 : i64, tpu.core_type = #tpu.core_type<tc>, window_params = [{transform_indices = @transform_0, window_bounds = array<i64: 1, 16, 16>}, {transform_indices = @transform_1, window_bounds = array<i64: 1, 16, 128>}, {transform_indices = @transform_2, window_bounds = array<i64: 1, 8, 128>}, {transform_indices = @transform_3, window_bounds = array<i64: 1, 16, 128>}]} {
    %c0 = arith.constant 0 : index
    %c0_0 = arith.constant 0 : index
    %c0_1 = arith.constant 0 : index
    %0 = vector.load %arg2[%c0, %c0_0, %c0_1] : memref<1x16x16xf32, #tpu.memory_space<vmem>>, vector<1x16x16xf32>
    %1 = vector.shape_cast %0 : vector<1x16x16xf32> to vector<16x16xf32>
    %c0_2 = arith.constant 0 : index
    %c0_3 = arith.constant 0 : index
    %c0_4 = arith.constant 0 : index
    %2 = vector.load %arg3[%c0_2, %c0_3, %c0_4] : memref<1x16x128xf32, #tpu.memory_space<vmem>>, vector<1x16x128xf32>
    %3 = vector.shape_cast %2 : vector<1x16x128xf32> to vector<16x128xf32>
    %cst = arith.constant dense<0.000000e+00> : vector<16x128xf32>
    %4 = tpu.matmul %1, %3, %cst {dimension_numbers = #tpu.dot_dimension_numbers<[1], [0], [0], [1], [0, 0, 1, 1], [], []>} : vector<16x16xf32>, vector<16x128xf32>, vector<16x128xf32> -> vector<16x128xf32>
    %5 = arith.negf %4 : vector<16x128xf32>
    %6 = math.exp %5 : vector<16x128xf32>
    %cst_5 = arith.constant 1.000000e+00 : f32
    %7 = vector.broadcast %cst_5 : f32 to vector<16x128xf32>
    %8 = arith.addf %7, %6 : vector<16x128xf32>
    %9 = arith.divf %7, %8 : vector<16x128xf32>
    %cst_6 = arith.constant 1.000000e+00 : f32
    %10 = vector.broadcast %cst_6 : f32 to vector<16x128xf32>
    %11 = arith.subf %10, %9 : vector<16x128xf32>
    %12 = arith.mulf %11, %11 : vector<16x128xf32>
    %cst_7 = arith.constant 2.500000e-01 : f32
    %13 = vector.broadcast %cst_7 : f32 to vector<16x128xf32>
    %14 = arith.mulf %13, %12 : vector<16x128xf32>
    %cst_8 = arith.constant 9.99999993E-9 : f32
    %15 = vector.broadcast %cst_8 : f32 to vector<16x128xf32>
    %16 = arith.addf %9, %15 : vector<16x128xf32>
    %17 = math.log %16 : vector<16x128xf32>
    %cst_9 = arith.constant 0.000000e+00 : f32
    %18 = vector.broadcast %cst_9 : f32 to vector<16x128xf32>
    %19 = arith.subf %18, %17 : vector<16x128xf32>
    %20 = arith.mulf %14, %19 : vector<16x128xf32>
    %21 = arith.mulf %9, %9 : vector<16x128xf32>
    %cst_10 = arith.constant 7.500000e-01 : f32
    %22 = vector.broadcast %cst_10 : f32 to vector<16x128xf32>
    %23 = arith.mulf %22, %21 : vector<16x128xf32>
    %cst_11 = arith.constant 9.99999993E-9 : f32
    %24 = vector.broadcast %cst_11 : f32 to vector<16x128xf32>
    %25 = arith.addf %11, %24 : vector<16x128xf32>
    %26 = math.log %25 : vector<16x128xf32>
    %cst_12 = arith.constant 0.000000e+00 : f32
    %27 = vector.broadcast %cst_12 : f32 to vector<16x128xf32>
    %28 = arith.subf %27, %26 : vector<16x128xf32>
    %29 = arith.mulf %23, %28 : vector<16x128xf32>
    %30 = arith.subf %20, %29 : vector<16x128xf32>
    %31 = vector.extract_strided_slice %1 {offsets = [0, 8], sizes = [16, 4], strides = [1, 1]} : vector<16x16xf32> to vector<16x4xf32>
    %32 = vector.extract_strided_slice %31 {offsets = [0, 0], sizes = [16, 1], strides = [1, 1]} : vector<16x4xf32> to vector<16x1xf32>
    %33 = vector.extract_strided_slice %31 {offsets = [0, 1], sizes = [16, 1], strides = [1, 1]} : vector<16x4xf32> to vector<16x1xf32>
    %34 = vector.extract_strided_slice %31 {offsets = [0, 2], sizes = [16, 1], strides = [1, 1]} : vector<16x4xf32> to vector<16x1xf32>
    %35 = vector.extract_strided_slice %31 {offsets = [0, 3], sizes = [16, 1], strides = [1, 1]} : vector<16x4xf32> to vector<16x1xf32>
    %c0_13 = arith.constant 0 : index
    %c0_14 = arith.constant 0 : index
    %c0_15 = arith.constant 0 : index
    %36 = vector.load %arg4[%c0_13, %c0_14, %c0_15] : memref<1x8x128xf32, #tpu.memory_space<vmem>>, vector<1x8x128xf32>
    %37 = vector.shape_cast %36 : vector<1x8x128xf32> to vector<8x128xf32>
    %38 = vector.extract_strided_slice %37 {offsets = [0, 0], sizes = [1, 128], strides = [1, 1]} : vector<8x128xf32> to vector<1x128xf32>
    %39 = vector.extract_strided_slice %37 {offsets = [1, 0], sizes = [1, 128], strides = [1, 1]} : vector<8x128xf32> to vector<1x128xf32>
    %40 = vector.extract_strided_slice %37 {offsets = [2, 0], sizes = [1, 128], strides = [1, 1]} : vector<8x128xf32> to vector<1x128xf32>
    %41 = vector.extract_strided_slice %37 {offsets = [3, 0], sizes = [1, 128], strides = [1, 1]} : vector<8x128xf32> to vector<1x128xf32>
    %42 = vector.extract_strided_slice %37 {offsets = [4, 0], sizes = [1, 128], strides = [1, 1]} : vector<8x128xf32> to vector<1x128xf32>
    %43 = vector.extract_strided_slice %37 {offsets = [5, 0], sizes = [1, 128], strides = [1, 1]} : vector<8x128xf32> to vector<1x128xf32>
    %44 = vector.extract_strided_slice %37 {offsets = [6, 0], sizes = [1, 128], strides = [1, 1]} : vector<8x128xf32> to vector<1x128xf32>
    %45 = vector.extract_strided_slice %37 {offsets = [7, 0], sizes = [1, 128], strides = [1, 1]} : vector<8x128xf32> to vector<1x128xf32>
    %46 = vector.broadcast %32 : vector<16x1xf32> to vector<16x128xf32>
    %47 = vector.broadcast %38 : vector<1x128xf32> to vector<16x128xf32>
    %48 = arith.subf %46, %47 : vector<16x128xf32>
    %49 = vector.broadcast %33 : vector<16x1xf32> to vector<16x128xf32>
    %50 = vector.broadcast %39 : vector<1x128xf32> to vector<16x128xf32>
    %51 = arith.subf %49, %50 : vector<16x128xf32>
    %52 = vector.broadcast %34 : vector<16x1xf32> to vector<16x128xf32>
    %53 = vector.broadcast %40 : vector<1x128xf32> to vector<16x128xf32>
    %54 = arith.subf %52, %53 : vector<16x128xf32>
    %55 = vector.broadcast %35 : vector<16x1xf32> to vector<16x128xf32>
    %56 = vector.broadcast %41 : vector<1x128xf32> to vector<16x128xf32>
    %57 = arith.subf %55, %56 : vector<16x128xf32>
    %58 = arith.mulf %48, %48 : vector<16x128xf32>
    %59 = arith.mulf %51, %51 : vector<16x128xf32>
    %60 = arith.addf %58, %59 : vector<16x128xf32>
    %61 = arith.mulf %54, %54 : vector<16x128xf32>
    %62 = arith.addf %60, %61 : vector<16x128xf32>
    %63 = arith.mulf %57, %57 : vector<16x128xf32>
    %64 = arith.addf %62, %63 : vector<16x128xf32>
    %65 = math.sqrt %64 : vector<16x128xf32>
    %cst_16 = arith.constant 5.000000e-01 : f32
    %66 = vector.broadcast %cst_16 : f32 to vector<16x1xf32>
    %67 = arith.mulf %66, %34 : vector<16x1xf32>
    %68 = arith.subf %32, %67 : vector<16x1xf32>
    %cst_17 = arith.constant 5.000000e-01 : f32
    %69 = vector.broadcast %cst_17 : f32 to vector<16x1xf32>
    %70 = arith.mulf %69, %35 : vector<16x1xf32>
    %71 = arith.subf %33, %70 : vector<16x1xf32>
    %cst_18 = arith.constant 5.000000e-01 : f32
    %72 = vector.broadcast %cst_18 : f32 to vector<16x1xf32>
    %73 = arith.mulf %72, %34 : vector<16x1xf32>
    %74 = arith.addf %32, %73 : vector<16x1xf32>
    %cst_19 = arith.constant 5.000000e-01 : f32
    %75 = vector.broadcast %cst_19 : f32 to vector<16x1xf32>
    %76 = arith.mulf %75, %35 : vector<16x1xf32>
    %77 = arith.addf %33, %76 : vector<16x1xf32>
    %78 = arith.mulf %34, %35 : vector<16x1xf32>
    %79 = arith.mulf %40, %41 : vector<1x128xf32>
    %80 = vector.broadcast %74 : vector<16x1xf32> to vector<16x128xf32>
    %81 = vector.broadcast %44 : vector<1x128xf32> to vector<16x128xf32>
    %82 = arith.minimumf %80, %81 : vector<16x128xf32>
    %83 = vector.broadcast %68 : vector<16x1xf32> to vector<16x128xf32>
    %84 = vector.broadcast %42 : vector<1x128xf32> to vector<16x128xf32>
    %85 = arith.maximumf %83, %84 : vector<16x128xf32>
    %86 = arith.subf %82, %85 : vector<16x128xf32>
    %cst_20 = arith.constant 0.000000e+00 : f32
    %87 = vector.broadcast %cst_20 : f32 to vector<16x128xf32>
    %88 = arith.maximumf %86, %87 : vector<16x128xf32>
    %89 = vector.broadcast %77 : vector<16x1xf32> to vector<16x128xf32>
    %90 = vector.broadcast %45 : vector<1x128xf32> to vector<16x128xf32>
    %91 = arith.minimumf %89, %90 : vector<16x128xf32>
    %92 = vector.broadcast %71 : vector<16x1xf32> to vector<16x128xf32>
    %93 = vector.broadcast %43 : vector<1x128xf32> to vector<16x128xf32>
    %94 = arith.maximumf %92, %93 : vector<16x128xf32>
    %95 = arith.subf %91, %94 : vector<16x128xf32>
    %cst_21 = arith.constant 0.000000e+00 : f32
    %96 = vector.broadcast %cst_21 : f32 to vector<16x128xf32>
    %97 = arith.maximumf %95, %96 : vector<16x128xf32>
    %98 = arith.mulf %88, %97 : vector<16x128xf32>
    %99 = vector.broadcast %78 : vector<16x1xf32> to vector<16x128xf32>
    %100 = vector.broadcast %79 : vector<1x128xf32> to vector<16x128xf32>
    %101 = arith.addf %99, %100 : vector<16x128xf32>
    %102 = arith.subf %101, %98 : vector<16x128xf32>
    %cst_22 = arith.constant 9.99999996E-13 : f32
    %103 = vector.broadcast %cst_22 : f32 to vector<16x128xf32>
    %104 = arith.maximumf %102, %103 : vector<16x128xf32>
    %105 = tpu.reciprocal %104 {approx = true} : vector<16x128xf32> -> vector<16x128xf32>
    %106 = arith.mulf %104, %105 : vector<16x128xf32>
    %cst_23 = arith.constant 2.000000e+00 : f32
    %107 = vector.broadcast %cst_23 : f32 to vector<16x128xf32>
    %108 = arith.subf %107, %106 : vector<16x128xf32>
    %109 = arith.mulf %105, %108 : vector<16x128xf32>
    %110 = arith.mulf %98, %109 : vector<16x128xf32>
    %111 = vector.broadcast %74 : vector<16x1xf32> to vector<16x128xf32>
    %112 = vector.broadcast %44 : vector<1x128xf32> to vector<16x128xf32>
    %113 = arith.maximumf %111, %112 : vector<16x128xf32>
    %114 = vector.broadcast %68 : vector<16x1xf32> to vector<16x128xf32>
    %115 = vector.broadcast %42 : vector<1x128xf32> to vector<16x128xf32>
    %116 = arith.minimumf %114, %115 : vector<16x128xf32>
    %117 = arith.subf %113, %116 : vector<16x128xf32>
    %cst_24 = arith.constant 0.000000e+00 : f32
    %118 = vector.broadcast %cst_24 : f32 to vector<16x128xf32>
    %119 = arith.maximumf %117, %118 : vector<16x128xf32>
    %120 = vector.broadcast %77 : vector<16x1xf32> to vector<16x128xf32>
    %121 = vector.broadcast %45 : vector<1x128xf32> to vector<16x128xf32>
    %122 = arith.maximumf %120, %121 : vector<16x128xf32>
    %123 = vector.broadcast %71 : vector<16x1xf32> to vector<16x128xf32>
    %124 = vector.broadcast %43 : vector<1x128xf32> to vector<16x128xf32>
    %125 = arith.minimumf %123, %124 : vector<16x128xf32>
    %126 = arith.subf %122, %125 : vector<16x128xf32>
    %cst_25 = arith.constant 0.000000e+00 : f32
    %127 = vector.broadcast %cst_25 : f32 to vector<16x128xf32>
    %128 = arith.maximumf %126, %127 : vector<16x128xf32>
    %129 = arith.mulf %119, %128 : vector<16x128xf32>
    %cst_26 = arith.constant 9.99999996E-13 : f32
    %130 = vector.broadcast %cst_26 : f32 to vector<16x128xf32>
    %131 = arith.maximumf %129, %130 : vector<16x128xf32>
    %132 = arith.subf %131, %104 : vector<16x128xf32>
    %133 = tpu.reciprocal %131 {approx = true} : vector<16x128xf32> -> vector<16x128xf32>
    %134 = arith.mulf %131, %133 : vector<16x128xf32>
    %cst_27 = arith.constant 2.000000e+00 : f32
    %135 = vector.broadcast %cst_27 : f32 to vector<16x128xf32>
    %136 = arith.subf %135, %134 : vector<16x128xf32>
    %137 = arith.mulf %133, %136 : vector<16x128xf32>
    %138 = arith.mulf %132, %137 : vector<16x128xf32>
    %139 = arith.subf %110, %138 : vector<16x128xf32>
    %cst_28 = arith.constant 1.000000e+00 : f32
    %140 = vector.broadcast %cst_28 : f32 to vector<16x128xf32>
    %141 = arith.mulf %140, %65 : vector<16x128xf32>
    %142 = arith.addf %141, %30 : vector<16x128xf32>
    %cst_29 = arith.constant -1.000000e+00 : f32
    %143 = vector.broadcast %cst_29 : f32 to vector<16x128xf32>
    %144 = arith.mulf %143, %139 : vector<16x128xf32>
    %145 = arith.addf %142, %144 : vector<16x128xf32>
    %c0_30 = arith.constant 0 : index
    %c0_31 = arith.constant 0 : index
    %c0_32 = arith.constant 0 : index
    %146 = vector.load %arg5[%c0_30, %c0_31, %c0_32] : memref<1x16x128xf32, #tpu.memory_space<vmem>>, vector<1x16x128xf32>
    %147 = vector.shape_cast %146 : vector<1x16x128xf32> to vector<16x128xf32>
    %148 = vector.shape_cast %145 : vector<16x128xf32> to vector<1x16x128xf32>
    tpu.vector_store %arg5[%c0_30, %c0_31, %c0_32], %148 {strides = array<i32>} : memref<1x16x128xf32, #tpu.memory_space<vmem>>, vector<1x16x128xf32>,
    return
  }
  func.func @transform_0(%arg0: i32, %arg1: i32) -> (i32, i32, i32) {
    %c0_i32 = arith.constant 0 : i32
    %c0_i32_0 = arith.constant 0 : i32
    return %arg0, %arg1, %c0_i32 : i32, i32, i32
  }
  func.func @transform_1(%arg0: i32, %arg1: i32) -> (i32, i32, i32) {
    %c0_i32 = arith.constant 0 : i32
    %c0_i32_0 = arith.constant 0 : i32
    %c0_i32_1 = arith.constant 0 : i32
    return %arg0, %c0_i32, %c0_i32_0 : i32, i32, i32
  }
  func.func @transform_2(%arg0: i32, %arg1: i32) -> (i32, i32, i32) {
    %c0_i32 = arith.constant 0 : i32
    %c0_i32_0 = arith.constant 0 : i32
    %c0_i32_1 = arith.constant 0 : i32
    return %arg0, %c0_i32, %c0_i32_0 : i32, i32, i32
  }
  func.func @transform_3(%arg0: i32, %arg1: i32) -> (i32, i32, i32) {
    %c0_i32 = arith.constant 0 : i32
    %c0_i32_0 = arith.constant 0 : i32
    return %arg0, %arg1, %c0_i32 : i32, i32, i32
  }
}

</mosaic_0001>

<llo_original>
// kernel: tpu_custom_call.1
$region0: #{tpu_custom_call.1}
  #allocation0 [shape = 'u32[]', space=smem, size = 0x4, offset = 0x4, fixed_abs, tag = 'smem constant byte address 0x4 - core index']
  #allocation1 [shape = 'u32[144,128]{1,0:T(1,128)}', space=vmem, size = 0x12000, scoped, tag = 'internal scratch']
  %s0 = inlined_call_operand.hbm [shape: f32[2,16,16], index: 0, kind: input, shape index: {}]
  %s1 = inlined_call_operand.hbm [shape: f32[2,16,128], index: 1, kind: input, shape index: {}]
  %s2 = inlined_call_operand.hbm [shape: f32[2,8,128], index: 2, kind: input, shape index: {}]
  %s3 = inlined_call_operand.hbm [shape: f32[2,16,128], index: 3, kind: output, shape index: {}]
  %s4 = sld [smem:[#allocation0]]
  $region57: #{tpu_custom_call.1} parent=0
    _
  %s6 = ssub.s32 1, %s4
  %s7 = scalar_select 0, %s6, %s4
  $region1: #{tpu_custom_call.1} parent=0
    #allocation2 [shape = 'u8[16384]{0}', space=vmem, size = 0x4000, scoped, tag = 'input window, operand 0']
    #allocation3 [shape = 's32[2]{0}', space=sflag, size = 0x8, scoped, tag = 'scoped memory for tpu_custom_call.1']
    #allocation4 [shape = 's32[2]{0}', space=sflag, size = 0x8, scoped, tag = 'scoped memory for tpu_custom_call.1']
    #allocation5 [shape = 'u8[16384]{0}', space=vmem, size = 0x4000, scoped, tag = 'input window, operand 1']
    #allocation6 [shape = 's32[2]{0}', space=sflag, size = 0x8, scoped, tag = 'scoped memory for tpu_custom_call.1']
    #allocation7 [shape = 'u8[8192]{0}', space=vmem, size = 0x2000, scoped, tag = 'input window, operand 2']
    #allocation8 [shape = 'u8[16384]{0}', space=vmem, size = 0x4000, scoped, tag = 'output window, operand 0']
    %8 = vsyncpa [#allocation3], 0
    %s9 = scalar_lea.sflag [#allocation3], 1
    %10 = vsyncpa %s9, 0
    %11 = vsyncpa [#allocation6], 0
    %s12 = scalar_lea.sflag [#allocation6], 1
    %13 = vsyncpa %s12, 0
    %14 = vsyncpa [#allocation4], 0
    %s15 = scalar_lea.sflag [#allocation4], 1
    %16 = vsyncpa %s15, 0
    loop: start=0, step=1, limit=4
    $region2: #{tpu_custom_call.1} parent=1 // loop_pre_header
      _
    $region3: #{tpu_custom_call.1} parent=1 // loop_header
      %s18 = sphi 0, %s22
      %p19 = scmp.ge.s32.totalorder %s18, 4
      %s25 = sphi 0, %s37
      %s26 = sphi 0, %s33
      %s27 = sphi 0, %s25
      %s28 = sphi 0, %s26
      %s29 = sphi 0, %s27
      %s30 = sphi 0, %s28
      %s42 = sphi 0, %s44
      %s45 = sphi 0, %s42
      %s46 = sphi 0, %s45
      %s62 = sphi 0, %s46
      %s68 = sphi 0, %s70
      %s71 = sphi 0, %s68
      %s72 = sphi 0, %s71
      %s88 = sphi 0, %s72
      %s94 = sphi 0, %s96
      %s97 = sphi 0, %s94
      %s98 = sphi 0, %s97
      %s114 = sphi 0, %s98
      %s122 = sphi 0, %s124
      %s125 = sphi 0, %s122
      %s126 = sphi 0, %s125
      %s142 = sphi 0, %s126
    $region4: #{tpu_custom_call.1} parent=1 // loop_header_branch
      %21 = sbr.rel (%p19) target = $region8
    $region5: #{tpu_custom_call.1} parent=1 // loop_body
      %s23 = ssub.s32 %s18, 1
      %s24 = ssub.s32 %s18, 2
      %s31 = sadd.s32 1, %s26
      %p32 = scmp.ge.s32.totalorder %s31, 1
      %s33 = scalar_select %p32, 0, %s31
      %s34 = sadd.s32 1, %s25
      %s35 = scalar_select %p32, %s34, %s25
      %p36 = scmp.ge.s32.totalorder %s35, 2
      %s37 = scalar_select %p36, 0, %s35
      %s38 = ssub.s32 %s25, %s37
      %s39 = ssub.s32 %s26, %s33
      %s40 = sor.u32 %s38, %s39
      %p41 = scmp.eq.s32.totalorder %s40, 0
      %s43 = sadd.s32 %s42, 1
      %s44 = scalar_select %p41, %s42, %s43
      %p47 = pneg %p41
      %p48 = scmp.eq.s32.totalorder %s18, 1
      %p49 = por %p47, %p48
      %p50 = scmp.ne.s32.totalorder %s42, %s45
      %p51 = scmp.eq.s32.totalorder %s18, 0
      %p52 = por %p50, %p51
      %p53 = scmp.ne.s32.totalorder %s42, %s45
      %p54 = scmp.eq.s32.totalorder %s23, 1
      %p55 = por %p53, %p54
      %p56 = scmp.ne.s32.totalorder %s45, %s46
      %p57 = scmp.eq.s32.totalorder %s23, 0
      %p58 = por %p56, %p57
      %p59 = scmp.ne.s32.totalorder %s45, %s46
      %p60 = scmp.eq.s32.totalorder %s24, 1
      %p61 = por %p59, %p60
      %p63 = scmp.ne.s32.totalorder %s46, %s62
      %p64 = scmp.eq.s32.totalorder %s24, 0
      %p65 = por %p63, %p64
      %s66 = ssub.s32 %s25, %s37
      %p67 = scmp.eq.s32.totalorder %s66, 0
      %s69 = sadd.s32 %s68, 1
      %s70 = scalar_select %p67, %s68, %s69
      %p73 = pneg %p67
      %p74 = scmp.eq.s32.totalorder %s18, 1
      %p75 = por %p73, %p74
      %p76 = scmp.ne.s32.totalorder %s68, %s71
      %p77 = scmp.eq.s32.totalorder %s18, 0
      %p78 = por %p76, %p77
      %p79 = scmp.ne.s32.totalorder %s68, %s71
      %p80 = scmp.eq.s32.totalorder %s23, 1
      %p81 = por %p79, %p80
      %p82 = scmp.ne.s32.totalorder %s71, %s72
      %p83 = scmp.eq.s32.totalorder %s23, 0
      %p84 = por %p82, %p83
      %p85 = scmp.ne.s32.totalorder %s71, %s72
      %p86 = scmp.eq.s32.totalorder %s24, 1
      %p87 = por %p85, %p86
      %p89 = scmp.ne.s32.totalorder %s72, %s88
      %p90 = scmp.eq.s32.totalorder %s24, 0
      %p91 = por %p89, %p90
      %s92 = ssub.s32 %s25, %s37
      %p93 = scmp.eq.s32.totalorder %s92, 0
      %s95 = sadd.s32 %s94, 1
      %s96 = scalar_select %p93, %s94, %s95
      %p99 = pneg %p93
      %p100 = scmp.eq.s32.totalorder %s18, 1
      %p101 = por %p99, %p100
      %p102 = scmp.ne.s32.totalorder %s94, %s97
      %p103 = scmp.eq.s32.totalorder %s18, 0
      %p104 = por %p102, %p103
      %p105 = scmp.ne.s32.totalorder %s94, %s97
      %p106 = scmp.eq.s32.totalorder %s23, 1
      %p107 = por %p105, %p106
      %p108 = scmp.ne.s32.totalorder %s97, %s98
      %p109 = scmp.eq.s32.totalorder %s23, 0
      %p110 = por %p108, %p109
      %p111 = scmp.ne.s32.totalorder %s97, %s98
      %p112 = scmp.eq.s32.totalorder %s24, 1
      %p113 = por %p111, %p112
      %p115 = scmp.ne.s32.totalorder %s98, %s114
      %p116 = scmp.eq.s32.totalorder %s24, 0
      %p117 = por %p115, %p116
      %s118 = ssub.s32 %s25, %s37
      %s119 = ssub.s32 %s26, %s33
      %s120 = sor.u32 %s118, %s119
      %p121 = scmp.eq.s32.totalorder %s120, 0
      %s123 = sadd.s32 %s122, 1
      %s124 = scalar_select %p121, %s122, %s123
      %p127 = pneg %p121
      %p128 = scmp.eq.s32.totalorder %s18, 1
      %p129 = por %p127, %p128
      %p130 = scmp.ne.s32.totalorder %s122, %s125
      %p131 = scmp.eq.s32.totalorder %s18, 0
      %p132 = por %p130, %p131
      %p133 = scmp.ne.s32.totalorder %s122, %s125
      %p134 = scmp.eq.s32.totalorder %s23, 1
      %p135 = por %p133, %p134
      %p136 = scmp.ne.s32.totalorder %s125, %s126
      %p137 = scmp.eq.s32.totalorder %s23, 0
      %p138 = por %p136, %p137
      %p139 = scmp.ne.s32.totalorder %s125, %s126
      %p140 = scmp.eq.s32.totalorder %s24, 1
      %p141 = por %p139, %p140
      %p143 = scmp.ne.s32.totalorder %s126, %s142
      %p144 = scmp.eq.s32.totalorder %s24, 0
      %p145 = por %p143, %p144
      %p146 = scmp.le.s32.totalorder 1, %s18
      %p147 = scmp.lt.s32.totalorder %s18, 3
      %p148 = pnand %p146, %p147
      %p149 = pneg %p148
      // Predicated region
      $region9: #{tpu_custom_call.1} parent=5 // pred_check
        _
      $region10: #{tpu_custom_call.1} parent=5 // pred_check_branch
        %151 = sbr.rel (%p148) target = $region12
      $region11: #{tpu_custom_call.1} parent=5 // pred_region
        %s152 = ssub.s32 %s18, 1
      $region12: #{tpu_custom_call.1} parent=5 // pred_fallthru
        _
      %p153 = scmp.lt.s32.totalorder %s18, 2
      // Predicated region
      $region13: #{tpu_custom_call.1} parent=5 // pred_check
        %p154 = pneg %p153
      $region14: #{tpu_custom_call.1} parent=5 // pred_check_branch
        %156 = sbr.rel (%p154) target = $region16
      $region15: #{tpu_custom_call.1} parent=5 // pred_region
        // Predicated region
        $region17: #{tpu_custom_call.1} parent=15 // pred_check
          %p157 = pneg %p52
        $region18: #{tpu_custom_call.1} parent=15 // pred_check_branch
          %159 = sbr.rel (%p157) target = $region20
        $region19: #{tpu_custom_call.1} parent=15 // pred_region
          %s160 = sand.u32 %s42, 1
          %s161 = scalar_lea.sflag [#allocation3], %s160
          %s162 = sand.u32 %s42, 1
          %s163 = smul.addr %s162, 16
          %s164 = scalar_lea.vmem [#allocation2], %s163
          %s165 = smul.u32 2, %s26
          %s167 = ssub.s32 256, 256
          %168 = vsyncadd %s161, %s167
          %s169 = smul.addr %s25, 2
          %s170 = sadd.s32 %s165, %s169
          %s171 = smul.addr %s170, 128
          %s172 = scalar_lea.hbm %s0, %s171
          %s173 = sshll.u32 %s164, 4
          %s174 = int_to_ptr.vmem [resolvable:$true] %s173
          %179 = dma.hbm_to_vmem [thread:$0]  %s172, 256, %s174, %s161, 128, 128, 8
        $region20: #{tpu_custom_call.1} parent=15 // pred_fallthru
          _
        // Predicated region
        $region21: #{tpu_custom_call.1} parent=15 // pred_check
          %p180 = pneg %p78
        $region22: #{tpu_custom_call.1} parent=15 // pred_check_branch
          %182 = sbr.rel (%p180) target = $region24
        $region23: #{tpu_custom_call.1} parent=15 // pred_region
          %s183 = sand.u32 %s18, 1
          %s184 = scalar_lea.sflag [#allocation6], %s183
          %s185 = sand.u32 %s68, 1
          %s186 = smul.addr %s185, 16
          %s187 = scalar_lea.vmem [#allocation5], %s186
          %s189 = ssub.s32 256, 256
          %190 = vsyncadd %s184, %s189
          %s191 = smul.addr %s25, 2
          %s192 = smul.addr %s191, 128
          %s193 = scalar_lea.hbm %s1, %s192
          %s194 = sshll.u32 %s187, 4
          %s195 = int_to_ptr.vmem [resolvable:$true] %s194
          %200 = dma.hbm_to_vmem [thread:$0]  %s193, 256, %s195, %s184, 128, 128, 8
        $region24: #{tpu_custom_call.1} parent=15 // pred_fallthru
          _
        // Predicated region
        $region25: #{tpu_custom_call.1} parent=15 // pred_check
          %p201 = pneg %p104
        $region26: #{tpu_custom_call.1} parent=15 // pred_check_branch
          %203 = sbr.rel (%p201) target = $region28
        $region27: #{tpu_custom_call.1} parent=15 // pred_region
          %s204 = sand.u32 %s18, 1
          %s205 = scalar_lea.sflag [#allocation6], %s204
          %s206 = sand.u32 %s94, 1
          %s207 = smul.addr %s206, 8
          %s208 = scalar_lea.vmem [#allocation7], %s207
          %s210 = ssub.s32 128, 128
          %211 = vsyncadd %s205, %s210
          %s212 = smul.addr %s25, 128
          %s213 = scalar_lea.hbm %s2, %s212
          %s215 = sshll.u32 %s208, 4
          %s216 = int_to_ptr.vmem [resolvable:$true] %s215
          %218 = dma.hbm_to_vmem [thread:$0]  %s213, 128, %s216, %s205
        $region28: #{tpu_custom_call.1} parent=15 // pred_fallthru
          _
      $region16: #{tpu_custom_call.1} parent=5 // pred_fallthru
        _
      %p219 = scmp.le.s32.totalorder 1, %s18
      %p220 = scmp.lt.s32.totalorder %s18, 3
      %p221 = pnand %p219, %p220
      %p222 = pneg %p221
      // Predicated region
      $region29: #{tpu_custom_call.1} parent=5 // pred_check
        _
      $region30: #{tpu_custom_call.1} parent=5 // pred_check_branch
        %224 = sbr.rel (%p221) target = $region32
      $region31: #{tpu_custom_call.1} parent=5 // pred_region
        %s225 = ssub.s32 %s18, 1
        %s226 = sand.u32 %s45, 1
        %s227 = scalar_lea.sflag [#allocation3], %s226
        %s228 = sand.u32 %s45, 1
        %s229 = smul.addr %s228, 16
        %s230 = scalar_lea.vmem [#allocation2], %s229
        // Predicated region
        $region33: #{tpu_custom_call.1} parent=31 // pred_check
          %p231 = pneg %p58
        $region34: #{tpu_custom_call.1} parent=31 // pred_check_branch
          %233 = sbr.rel (%p231) target = $region36
        $region35: #{tpu_custom_call.1} parent=31 // pred_region
          %234 = dma.done %s227, 256
        $region36: #{tpu_custom_call.1} parent=31 // pred_fallthru
          _
        %s235 = sand.u32 %s23, 1
        %s236 = scalar_lea.sflag [#allocation6], %s235
        %s237 = sand.u32 %s71, 1
        %s238 = smul.addr %s237, 16
        %s239 = scalar_lea.vmem [#allocation5], %s238
        // Predicated region
        $region37: #{tpu_custom_call.1} parent=31 // pred_check
          %p240 = pneg %p84
        $region38: #{tpu_custom_call.1} parent=31 // pred_check_branch
          %242 = sbr.rel (%p240) target = $region40
        $region39: #{tpu_custom_call.1} parent=31 // pred_region
          %243 = dma.done %s236, 256
        $region40: #{tpu_custom_call.1} parent=31 // pred_fallthru
          _
        %s244 = sand.u32 %s23, 1
        %s245 = scalar_lea.sflag [#allocation6], %s244
        %s246 = sand.u32 %s97, 1
        %s247 = smul.addr %s246, 8
        %s248 = scalar_lea.vmem [#allocation7], %s247
        // Predicated region
        $region41: #{tpu_custom_call.1} parent=31 // pred_check
          %p249 = pneg %p110
        $region42: #{tpu_custom_call.1} parent=31 // pred_check_branch
          %251 = sbr.rel (%p249) target = $region44
        $region43: #{tpu_custom_call.1} parent=31 // pred_region
          %252 = dma.done %s245, 128
        $region44: #{tpu_custom_call.1} parent=31 // pred_fallthru
          _
        %s253 = sand.u32 %s45, 1
        %s254 = scalar_lea.sflag [#allocation3], %s253
        %s255 = sand.u32 %s45, 1
        %s256 = smul.addr %s255, 16
        %s257 = scalar_lea.vmem [#allocation2], %s256
        %p258 = pneg %p58
        %p259 = pneg %p55
        %s260 = sand.u32 %s23, 1
        %s261 = scalar_lea.sflag [#allocation6], %s260
        %s262 = sand.u32 %s71, 1
        %s263 = smul.addr %s262, 16
        %s264 = scalar_lea.vmem [#allocation5], %s263
        %p265 = pneg %p84
        %p266 = pneg %p81
        %s267 = sand.u32 %s23, 1
        %s268 = scalar_lea.sflag [#allocation6], %s267
        %s269 = sand.u32 %s97, 1
        %s270 = smul.addr %s269, 8
        %s271 = scalar_lea.vmem [#allocation7], %s270
        %p272 = pneg %p110
        %p273 = pneg %p107
        %p274 = pneg %p138
        %p275 = pneg %p135
        %s276 = sand.u32 %s125, 1
        %s277 = scalar_lea.sflag [#allocation4], %s276
        %s278 = sand.u32 %s125, 1
        %s279 = smul.addr %s278, 16
        %s280 = scalar_lea.vmem [#allocation8], %s279
        %s281 = smul.u32 2, %s28
        %s282 = smul.u32 2, %s28
        %v283 = vld [vmem:[%s230] sm:$0xff]
        %v284 = vld [vmem:[%s230 + $0x8] sm:$0xff]
        %v285 = vld [vmem:[%s239] sm:$0xff]
        %v286 = vld [vmem:[%s239 + $0x8] sm:$0xff]
        %vm287 = vcmask 130048
        %v289 = vsel %vm287, %v283, 0
        %v292 = vsel %vm287, %v284, 0
        %294 = vmatprep.subr.mxu0 0.0
        %295 = vmatpush1.msra.mxu0 %v285
        %296 = vmatprep.subr.mxu0 0.0
        %297 = vmatpush1.msra.mxu0 %v286
        %298 = vmatprep.subr.mxu0 0.0
        %299 = vmatpush1.msra.mxu0 0.0
        %300 = vmatprep.subr.mxu0 0.0
        %301 = vmatpush1.msra.mxu0 0.0
        %302 = vmatprep.subr.mxu0 0.0
        %303 = vmatpush1.msra.mxu0 0.0
        %304 = vmatprep.subr.mxu0 0.0
        %305 = vmatpush1.msra.mxu0 0.0
        %306 = vmatprep.subr.mxu0 0.0
        %307 = vmatpush1.msra.mxu0 0.0
        %308 = vmatprep.subr.mxu0 0.0
        %309 = vmatpush1.msra.mxu0 0.0
        %310 = vmatprep.subr.mxu0 0.0
        %311 = vmatpush1.msra.mxu0 0.0
        %312 = vmatprep.subr.mxu0 0.0
        %313 = vmatpush1.msra.mxu0 0.0
        %314 = vmatprep.subr.mxu0 0.0
        %315 = vmatpush1.msra.mxu0 0.0
        %316 = vmatprep.subr.mxu0 0.0
        %317 = vmatpush1.msra.mxu0 0.0
        %318 = vmatprep.subr.mxu0 0.0
        %319 = vmatpush1.msra.mxu0 0.0
        %320 = vmatprep.subr.mxu0 0.0
        %321 = vmatpush1.msra.mxu0 0.0
        %322 = vmatprep.subr.mxu0 0.0
        %323 = vmatpush1.msra.mxu0 0.0
        %324 = vmatprep.subr.mxu0 0.0
        %325 = vmatpush1.msra.mxu0 0.0
        %326 = vmatprep.subr.mxu0 0.0
        %327 = vmatpush1.msra.mxu0 0.0
        %328 = vmatprep.subr.mxu0 0.0
        %329 = vmatpush1.msra.mxu0 0.0
        %330 = vmatprep.subr.mxu0 0.0
        %331 = vmatpush1.msra.mxu0 0.0
        %332 = vmatprep.subr.mxu0 0.0
        %333 = vmatpush1.msra.mxu0 0.0
        %334 = vmatprep.subr.mxu0 0.0
        %335 = vmatpush1.msra.mxu0 0.0
        %336 = vmatprep.subr.mxu0 0.0
        %337 = vmatpush1.msra.mxu0 0.0
        %338 = vmatprep.subr.mxu0 0.0
        %339 = vmatpush1.msra.mxu0 0.0
        %340 = vmatprep.subr.mxu0 0.0
        %341 = vmatpush1.msra.mxu0 0.0
        %342 = vmatprep.subr.mxu0 0.0
        %343 = vmatpush1.msra.mxu0 0.0
        %344 = vmatprep.subr.mxu0 0.0
        %345 = vmatpush1.msra.mxu0 0.0
        %346 = vmatprep.subr.mxu0 0.0
        %347 = vmatpush1.msra.mxu0 0.0
        %348 = vmatprep.subr.mxu0 0.0
        %349 = vmatpush1.msra.mxu0 0.0
        %350 = vmatprep.subr.mxu0 0.0
        %351 = vmatpush1.msra.mxu0 0.0
        %352 = vmatprep.subr.mxu0 0.0
        %353 = vmatpush1.msra.mxu0 0.0
        %354 = vmatprep.subr.mxu0 0.0
        %355 = vmatpush1.msra.mxu0 0.0
        %356 = vmatprep.subr.mxu0 0.0
        %357 = vmatpush1.msra.mxu0 0.0
        %358 = vmatprep.mubr.f32.mxu0 0.0
        %359 = vmatmul.mubr.f32.gmra.mrb[0].mxu0 %v289
        %v360 = vpop.f32.mrb[0].mxu0
        %v361 = vadd.f32 0.0, %v360
        %v362 = vpop.f32.mrb[0].mxu0
        %363 = vmatprep.mubr.f32.mxu0 0.0
        %364 = vmatmul.mubr.f32.gmra.mrb[0].mxu0 %v292
        %v365 = vpop.f32.mrb[0].mxu0
        %v366 = vadd.f32 0.0, %v365
        %v367 = vpop.f32.mrb[0].mxu0
        %368 = vdwg.mxu0
        %v369 = vxor.u32 %v361, 2147483648
        %v370 = vxor.u32 %v366, 2147483648
        %v371 = vmul.f32 %v369, 1.442695
        %v372 = vpow.pop %v371
        %v373 = vmul.f32 %v370, 1.442695
        %v374 = vpow.pop %v373
        %v375 = vadd.f32 %v372, 1.0
        %v376 = vadd.f32 %v374, 1.0
        %v377 = vrcp.pop %v375
        %v378 = vmul.f32 1.0, %v377
        %v379 = vrcp.pop %v376
        %v380 = vmul.f32 1.0, %v379
        %v381 = vsub.f32 1.0, %v378
        %v382 = vsub.f32 1.0, %v380
        %v383 = vmul.f32 %v381, %v381
        %v384 = vmul.f32 %v382, %v382
        %v385 = vmul.f32 %v383, 0.25
        %v386 = vmul.f32 %v384, 0.25
        %v387 = vadd.f32 %v378, 1e-08
        %v388 = vadd.f32 %v380, 1e-08
        %v389 = vlog2.pop %v387
        %v390 = vmul.f32 %v389, 0.6931472
        %v391 = vlog2.pop %v388
        %v392 = vmul.f32 %v391, 0.6931472
        %v393 = vsub.f32 0.0, %v390
        %v394 = vsub.f32 0.0, %v392
        %v395 = vmul.f32 %v385, %v393
        %v396 = vmul.f32 %v386, %v394
        %v397 = vmul.f32 %v378, %v378
        %v398 = vmul.f32 %v380, %v380
        %v399 = vmul.f32 %v397, 0.75
        %v400 = vmul.f32 %v398, 0.75
        %v401 = vadd.f32 %v381, 1e-08
        %v402 = vadd.f32 %v382, 1e-08
        %v403 = vlog2.pop %v401
        %v404 = vmul.f32 %v403, 0.6931472
        %v405 = vlog2.pop %v402
        %v406 = vmul.f32 %v405, 0.6931472
        %v407 = vsub.f32 0.0, %v404
        %v408 = vsub.f32 0.0, %v406
        %v409 = vmul.f32 %v399, %v407
        %v410 = vmul.f32 %v400, %v408
        %v411 = vsub.f32 %v395, %v409
        %v412 = vsub.f32 %v396, %v410
        %v413 = vld [vmem:[%s248] sm:$0xff]
        %414 = vset.pattern.permute.xlu0 8
        %415 = vperm.xlu0 %414, %v283
        %v416 = vpop.permute.xlu0 %415
        %418 = vset.pattern.permute.xlu0 8
        %419 = vperm.xlu0 %418, %v284
        %v420 = vpop.permute.xlu0 %419
        %v422 = vlaneseq
        %v423 = vshrl.u32 %v422, 7
        %v424 = vsub.s32 0, %v423
        %v425 = vrot.slane %v413, %v424
        %v426 = vsub.f32 %v416, %v425
        %v427 = vsub.f32 %v420, %v425
        %428 = vset.pattern.permute.xlu0 9
        %429 = vperm.xlu0 %428, %v283
        %v430 = vpop.permute.xlu0 %429
        %432 = vset.pattern.permute.xlu0 9
        %433 = vperm.xlu0 %432, %v284
        %v434 = vpop.permute.xlu0 %433
        %v436 = vlaneseq
        %v437 = vshrl.u32 %v436, 7
        %v438 = vsub.s32 1, %v437
        %v439 = vrot.slane %v413, %v438
        %v440 = vsub.f32 %v430, %v439
        %v441 = vsub.f32 %v434, %v439
        %442 = vset.pattern.permute.xlu0 10
        %443 = vperm.xlu0 %442, %v283
        %v444 = vpop.permute.xlu0 %443
        %446 = vset.pattern.permute.xlu0 10
        %447 = vperm.xlu0 %446, %v284
        %v448 = vpop.permute.xlu0 %447
        %v450 = vlaneseq
        %v451 = vshrl.u32 %v450, 7
        %v452 = vsub.s32 2, %v451
        %v453 = vrot.slane %v413, %v452
        %v454 = vsub.f32 %v444, %v453
        %v455 = vsub.f32 %v448, %v453
        %456 = vset.pattern.permute.xlu0 11
        %457 = vperm.xlu0 %456, %v283
        %v458 = vpop.permute.xlu0 %457
        %460 = vset.pattern.permute.xlu0 11
        %461 = vperm.xlu0 %460, %v284
        %v462 = vpop.permute.xlu0 %461
        %v464 = vlaneseq
        %v465 = vshrl.u32 %v464, 7
        %v466 = vsub.s32 3, %v465
        %v467 = vrot.slane %v413, %v466
        %v468 = vsub.f32 %v458, %v467
        %v469 = vsub.f32 %v462, %v467
        %v470 = vmul.f32 %v426, %v426
        %v471 = vmul.f32 %v427, %v427
        %v472 = vmul.f32 %v440, %v440
        %v473 = vmul.f32 %v441, %v441
        %v474 = vadd.f32 %v470, %v472
        %v475 = vadd.f32 %v471, %v473
        %v476 = vmul.f32 %v454, %v454
        %v477 = vmul.f32 %v455, %v455
        %v478 = vadd.f32 %v474, %v476
        %v479 = vadd.f32 %v475, %v477
        %v480 = vmul.f32 %v468, %v468
        %v481 = vmul.f32 %v469, %v469
        %v482 = vadd.f32 %v478, %v480
        %v483 = vadd.f32 %v479, %v481
        %v484 = vrsqrt.pop %v482
        %v485 = vmul.f32 %v482, %v484
        %vm486 = vcmp.eq.f32.partialorder %v482, inf
        %v487 = vsel %vm486, %v482, %v485
        %vm488 = vcmp.eq.f32.partialorder %v482, 0.0
        %v489 = vand.u32 %v482, 2147483648
        %v490 = vsel %vm488, %v489, %v487
        %v491 = vrsqrt.pop %v483
        %v492 = vmul.f32 %v483, %v491
        %vm493 = vcmp.eq.f32.partialorder %v483, inf
        %v494 = vsel %vm493, %v483, %v492
        %vm495 = vcmp.eq.f32.partialorder %v483, 0.0
        %v496 = vand.u32 %v483, 2147483648
        %v497 = vsel %vm495, %v496, %v494
        %v498 = vmul.f32 %v283, 0.5
        %v499 = vmul.f32 %v284, 0.5
        %502 = vrot.lane.b32.xlu0 %v498, 126
        %v503 = vpop.permute.xlu0 %502
        %504 = vrot.lane.b32.xlu0 %v499, 126
        %v505 = vpop.permute.xlu0 %504
        %v508 = vsub.f32 %v283, %v503
        %v509 = vsub.f32 %v284, %v505
        %v510 = vadd.f32 %v283, %v503
        %v511 = vadd.f32 %v284, %v505
        %512 = vrot.lane.b32.xlu0 %v283, 127
        %v513 = vpop.permute.xlu0 %512
        %514 = vrot.lane.b32.xlu0 %v284, 127
        %v515 = vpop.permute.xlu0 %514
        %v518 = vmul.f32 %v283, %v513
        %v519 = vmul.f32 %v284, %v515
        %v521 = vrot.slane %v413, 1
        %v523 = vmul.f32 %v413, %v521
        %525 = vset.pattern.permute.xlu0 8
        %526 = vperm.xlu0 %525, %v510
        %v527 = vpop.permute.xlu0 %526
        %530 = vset.pattern.permute.xlu0 8
        %531 = vperm.xlu0 %530, %v511
        %v532 = vpop.permute.xlu0 %531
        %v534 = vlaneseq
        %v535 = vshrl.u32 %v534, 7
        %v536 = vsub.s32 6, %v535
        %v537 = vrot.slane %v413, %v536
        %v538 = vmin.f32 %v527, %v537
        %v539 = vmin.f32 %v532, %v537
        %541 = vset.pattern.permute.xlu0 8
        %542 = vperm.xlu0 %541, %v508
        %v543 = vpop.permute.xlu0 %542
        %546 = vset.pattern.permute.xlu0 8
        %547 = vperm.xlu0 %546, %v509
        %v548 = vpop.permute.xlu0 %547
        %v550 = vlaneseq
        %v551 = vshrl.u32 %v550, 7
        %v552 = vsub.s32 4, %v551
        %v553 = vrot.slane %v413, %v552
        %v554 = vmax.f32 %v543, %v553
        %v555 = vmax.f32 %v548, %v553
        %v556 = vsub.f32 %v538, %v554
        %v557 = vsub.f32 %v539, %v555
        %v558 = vmax.f32 %v556, 0.0
        %v559 = vmax.f32 %v557, 0.0
        %560 = vset.pattern.permute.xlu0 9
        %561 = vperm.xlu0 %560, %v510
        %v562 = vpop.permute.xlu0 %561
        %564 = vset.pattern.permute.xlu0 9
        %565 = vperm.xlu0 %564, %v511
        %v566 = vpop.permute.xlu0 %565
        %v568 = vlaneseq
        %v569 = vshrl.u32 %v568, 7
        %v570 = vsub.s32 7, %v569
        %v571 = vrot.slane %v413, %v570
        %v572 = vmin.f32 %v562, %v571
        %v573 = vmin.f32 %v566, %v571
        %574 = vset.pattern.permute.xlu0 9
        %575 = vperm.xlu0 %574, %v508
        %v576 = vpop.permute.xlu0 %575
        %578 = vset.pattern.permute.xlu0 9
        %579 = vperm.xlu0 %578, %v509
        %v580 = vpop.permute.xlu0 %579
        %v582 = vlaneseq
        %v583 = vshrl.u32 %v582, 7
        %v584 = vsub.s32 5, %v583
        %v585 = vrot.slane %v413, %v584
        %v586 = vmax.f32 %v576, %v585
        %v587 = vmax.f32 %v580, %v585
        %v588 = vsub.f32 %v572, %v586
        %v589 = vsub.f32 %v573, %v587
        %v590 = vmax.f32 %v588, 0.0
        %v591 = vmax.f32 %v589, 0.0
        %v592 = vmul.f32 %v558, %v590
        %v593 = vmul.f32 %v559, %v591
        %595 = vset.pattern.permute.xlu0 10
        %596 = vperm.xlu0 %595, %v518
        %v597 = vpop.permute.xlu0 %596
        %600 = vset.pattern.permute.xlu0 10
        %601 = vperm.xlu0 %600, %v519
        %v602 = vpop.permute.xlu0 %601
        %v604 = vlaneseq
        %v605 = vshrl.u32 %v604, 7
        %v606 = vsub.s32 2, %v605
        %v607 = vrot.slane %v523, %v606
        %v608 = vadd.f32 %v597, %v607
        %v609 = vadd.f32 %v602, %v607
        %v610 = vsub.f32 %v608, %v592
        %v611 = vsub.f32 %v609, %v593
        %v612 = vmax.f32 %v610, 1e-12
        %v613 = vmax.f32 %v611, 1e-12
        %v614 = vrcp.pop %v612
        %v615 = vrcp.pop %v613
        %v616 = vmul.f32 %v612, %v614
        %v617 = vmul.f32 %v613, %v615
        %v618 = vsub.f32 2.0, %v616
        %v619 = vsub.f32 2.0, %v617
        %v620 = vmul.f32 %v614, %v618
        %v621 = vmul.f32 %v615, %v619
        %v622 = vmul.f32 %v592, %v620
        %v623 = vmul.f32 %v593, %v621
        %v624 = vmax.f32 %v527, %v537
        %v625 = vmax.f32 %v532, %v537
        %v626 = vmin.f32 %v543, %v553
        %v627 = vmin.f32 %v548, %v553
        %v628 = vsub.f32 %v624, %v626
        %v629 = vsub.f32 %v625, %v627
        %v630 = vmax.f32 %v628, 0.0
        %v631 = vmax.f32 %v629, 0.0
        %v632 = vmax.f32 %v562, %v571
        %v633 = vmax.f32 %v566, %v571
        %v634 = vmin.f32 %v576, %v585
        %v635 = vmin.f32 %v580, %v585
        %v636 = vsub.f32 %v632, %v634
        %v637 = vsub.f32 %v633, %v635
        %v638 = vmax.f32 %v636, 0.0
        %v639 = vmax.f32 %v637, 0.0
        %v640 = vmul.f32 %v630, %v638
        %v641 = vmul.f32 %v631, %v639
        %v642 = vmax.f32 %v640, 1e-12
        %v643 = vmax.f32 %v641, 1e-12
        %v644 = vsub.f32 %v642, %v612
        %v645 = vsub.f32 %v643, %v613
        %v646 = vrcp.pop %v642
        %v647 = vrcp.pop %v643
        %v648 = vmul.f32 %v642, %v646
        %v649 = vmul.f32 %v643, %v647
        %v650 = vsub.f32 2.0, %v648
        %v651 = vsub.f32 2.0, %v649
        %v652 = vmul.f32 %v646, %v650
        %v653 = vmul.f32 %v647, %v651
        %v654 = vmul.f32 %v644, %v652
        %v655 = vmul.f32 %v645, %v653
        %v656 = vsub.f32 %v622, %v654
        %v657 = vsub.f32 %v623, %v655
        %v658 = vadd.f32 %v490, %v411
        %v659 = vadd.f32 %v497, %v412
        %v660 = vmul.f32 %v656, -1.0
        %v661 = vmul.f32 %v657, -1.0
        %v662 = vadd.f32 %v658, %v660
        %v663 = vadd.f32 %v659, %v661
        %664 = vst [vmem:[%s280] sm:$0xff] %v662
        %665 = vst [vmem:[%s280 + $0x8] sm:$0xff] %v663
        %s666 = sand.u32 %s125, 1
        %s667 = scalar_lea.sflag [#allocation4], %s666
        %s668 = sand.u32 %s125, 1
        %s669 = smul.addr %s668, 16
        %s670 = scalar_lea.vmem [#allocation8], %s669
        // Predicated region
        $region45: #{tpu_custom_call.1} parent=31 // pred_check
          %p671 = pneg %p135
        $region46: #{tpu_custom_call.1} parent=31 // pred_check_branch
          %673 = sbr.rel (%p671) target = $region48
        $region47: #{tpu_custom_call.1} parent=31 // pred_region
          %s674 = smul.u32 2, %s28
          %s676 = ssub.s32 256, 256
          %677 = vsyncadd %s667, %s676
          %s678 = smul.addr %s27, 2
          %s679 = sadd.s32 %s674, %s678
          %s680 = smul.addr %s679, 128
          %s681 = scalar_lea.hbm %s3, %s680
          %s682 = sshll.u32 %s670, 4
          %s683 = int_to_ptr.vmem [resolvable:$true] %s682
          %688 = dma.vmem_to_hbm [thread:$0]  %s683, 256, %s681, %s667, 128, 128, 8
        $region48: #{tpu_custom_call.1} parent=31 // pred_fallthru
          _
      $region32: #{tpu_custom_call.1} parent=5 // pred_fallthru
        _
      %p689 = scmp.le.s32.totalorder 2, %s18
      // Predicated region
      $region49: #{tpu_custom_call.1} parent=5 // pred_check
        %p690 = pneg %p689
      $region50: #{tpu_custom_call.1} parent=5 // pred_check_branch
        %692 = sbr.rel (%p690) target = $region52
      $region51: #{tpu_custom_call.1} parent=5 // pred_region
        %s693 = ssub.s32 %s18, 2
        // Predicated region
        $region53: #{tpu_custom_call.1} parent=51 // pred_check
          %p694 = pneg %p141
        $region54: #{tpu_custom_call.1} parent=51 // pred_check_branch
          %696 = sbr.rel (%p694) target = $region56
        $region55: #{tpu_custom_call.1} parent=51 // pred_region
          %s697 = sand.u32 %s126, 1
          %s698 = scalar_lea.sflag [#allocation4], %s697
          %s699 = sand.u32 %s126, 1
          %s700 = smul.addr %s699, 16
          %s701 = scalar_lea.vmem [#allocation8], %s700
          %702 = dma.done %s698, 256
        $region56: #{tpu_custom_call.1} parent=51 // pred_fallthru
          _
      $region52: #{tpu_custom_call.1} parent=5 // pred_fallthru
        _
    $region6: #{tpu_custom_call.1} parent=1 // loop_footer
      %s22 = sadd.s32 1, %s18
    $region7: #{tpu_custom_call.1} parent=1 // loop_footer_branch
      %17 = sbr.rel target = $region3
    $region8: #{tpu_custom_call.1} parent=1 // loop_exit
      _
    %703 = vsyncpa [#allocation3], 1
    %s704 = scalar_lea.sflag [#allocation3], 1
    %705 = vsyncpa %s704, 1
    %706 = vsyncpa [#allocation6], 1
    %s707 = scalar_lea.sflag [#allocation6], 1
    %708 = vsyncpa %s707, 1
    %709 = vsyncpa [#allocation4], 1
    %s710 = scalar_lea.sflag [#allocation4], 1
    %711 = vsyncpa %s710, 1

</llo_original>
